<compile_context>
chip_gen: v6e
topology: v6e:2x2x1
jax: 0.10.0
libtpu: 0.0.40
codegen_flags: <defaults>
</compile_context>

<pallas_src>
import functools

import jax
import jax.numpy as jnp
from jax.experimental import pallas as pl
from jax.experimental.pallas import tpu as pltpu


def _hybrid_stats_kernel(x_ref, t_ref, out_ref, *, gamma, num_classes,
                         hw, blocks_per_chunk, ragged):
    # x_ref:   (1, C, ts, 128)   logits  -- spatial on sublanes AND lanes
    # t_ref:   (1, 1, ts, 128)   int32 labels
    # out_ref: (1, 4*C, 8, 128)  resident per-(n,p) accumulator:
    #          rows [k*C:(k+1)*C] hold stat k in {focal(=mod*logpt), tp, g, pt}
    C = num_classes
    ts = x_ref.shape[2]
    s = pl.program_id(2)

    @pl.when(s == 0)
    def _():
        out_ref[...] = jnp.zeros_like(out_ref)

    x = x_ref[0].astype(jnp.float32)             # (C, ts, 128)
    labels = t_ref[0, 0]                         # (ts, 128) int32

    if ragged:
        # Validity mask for wrapper padding and the ragged last block (whose
        # out-of-bounds region holds undefined data).  Invalid positions are
        # neutralized via selects, so NaN/Inf garbage can never propagate.
        blk = pl.program_id(1) * blocks_per_chunk + s
        row = jax.lax.broadcasted_iota(jnp.int32, (ts, 128), 0)
        lane = jax.lax.broadcasted_iota(jnp.int32, (ts, 128), 1)
        pos = blk * (ts * 128) + row * 128 + lane
        valid = pos < hw                          # (ts, 128) bool
        labels = jnp.where(valid, labels, -1)     # -1 matches no class

    if C > 1:
        # Softmax over the class axis: class is an *outer* dim, so max / sum
        # are plain elementwise VPU ops over C dense (ts, 128) slabs.
        m = x[0]
        for c in range(1, C):
            m = jnp.maximum(m, x[c])              # (ts, 128)
        z = x - m[None]
        e = jnp.exp(z)                            # one EUP exp per element
        ssum = e[0]
        for c in range(1, C):
            ssum = ssum + e[c]
        inv = 1.0 / ssum                          # ONE divide per column
        pt = e * inv[None]
        logpt = z - jnp.log(ssum)[None]
        omp = 1.0 - pt
    else:
        # TODO(synk): C==1 sigmoid path mirrors one_hot(target, 1) semantics;
        # verify against the PyTorch C==1 behavior before relying on it.
        logpt = -jax.nn.softplus(-x)              # log sigmoid(x)
        pt = jnp.exp(logpt)                       # sigmoid(x)
        omp = jnp.exp(-jax.nn.softplus(x))        # sigmoid(-x) == 1 - pt, stable

    # Focal modulating factor (1-pt)**gamma: integer gamma stays on the VPU.
    if float(gamma) == int(gamma) and int(gamma) >= 0:
        gi = int(gamma)
        if gi == 0:
            focal_val = logpt
        else:
            mod = omp
            for _ in range(gi - 1):
                mod = mod * omp
            focal_val = mod * logpt
    else:
        focal_val = (omp ** gamma) * logpt
    # NOTE: the focal sign flip (-...) is applied in the JAX epilogue.

    # One-hot as a bool mask; iota along the outer (class) dim lowers to
    # per-class constant splats.  All masked stats use selects, not multiplies.
    cls = jax.lax.broadcasted_iota(jnp.int32, (C, ts, 128), 0)
    is_t = labels[None] == cls                    # (C, ts, 128) bool

    focal = jnp.where(is_t, focal_val, 0.0)
    tp_v = jnp.where(is_t, pt, 0.0)
    g_v = jnp.where(is_t, 1.0, 0.0)
    pt_v = jnp.where(valid[None], pt, 0.0) if ragged else pt

    def fold(a):
        # (C, ts, 128) -> (C, 8, 128): sum 8-sublane groups, pure vreg adds.
        acc = a[:, 0:8, :]
        for i in range(1, ts // 8):
            acc = acc + a[:, 8 * i:8 * (i + 1), :]
        return acc

    out_ref[0, 0 * C:1 * C] += fold(focal)
    out_ref[0, 1 * C:2 * C] += fold(tp_v)
    out_ref[0, 2 * C:3 * C] += fold(g_v)
    out_ref[0, 3 * C:4 * C] += fold(pt_v)


def _pick_sublane_tile(r, c, x_itemsize, budget_bytes):
    """Sublane tile ts (rows of 128 positions): multiple of 16, VMEM-capped."""
    # Bytes per sublane-row: double-buffered x + label blocks, plus ~10 live
    # f32 (C, 128) in-kernel temporaries (e, pt, logpt, mod, selects, ...).
    per_row = 2 * (c * 128 * x_itemsize + 128 * 4) + 10 * c * 128 * 4
    ts = int(budget_bytes // per_row)
    ts = min(ts, 256)                 # >32k positions/step buys nothing (roofline)
    ts = max(16, (ts // 16) * 16)
    return min(ts, r), per_row


def hybrid_loss(x, target, *, gamma=2, weight_c=None, weight_v=None,
                alpha=0.5, beta=0.5, smooth=1e-07, vmem_budget_bytes=8 << 20):
    """JAX/Pallas equivalent of HybirdLoss.forward."""
    del weight_c  # Faithful to the reference: weight_c is overwritten there.
    N, C = int(x.shape[0]), int(x.shape[1])
    hw = 1
    for d in x.shape[2:]:
        hw *= int(d)

    # Free reshapes; no dtype upcast (bf16 logits would be cast in-kernel).
    x3 = jnp.reshape(x, (N, C, hw))
    t3 = jnp.reshape(target, (N, 1, hw)).astype(jnp.int32)

    # View the spatial axis as (R, 128): pad hw up to a multiple of 2048
    # (16 sublanes x 128 lanes) so R is a multiple of 16 for any dtype.
    hw_pad = -(-hw // 2048) * 2048
    if hw_pad != hw:
        # TODO(synk): non-2048-multiple spatial extents incur one HBM pad copy.
        x3 = jnp.pad(x3, ((0, 0), (0, 0), (0, hw_pad - hw)))
        t3 = jnp.pad(t3, ((0, 0), (0, 0), (0, hw_pad - hw)), constant_values=-1)
    R = hw_pad // 128
    x4 = jnp.reshape(x3, (N, C, R, 128))
    t4 = jnp.reshape(t3, (N, 1, R, 128))

    ts, per_row = _pick_sublane_tile(R, C, x4.dtype.itemsize, vmem_budget_bytes)
    SB = -(-R // ts)                      # spatial blocks per batch item (cdiv)
    P = 2 if SB % 2 == 0 else 1           # second parallel axis (v7x megacore)
    S = SB // P                           # sequential blocks per (n, p)
    ragged = (SB * ts * 128) != hw        # any padded / out-of-bounds positions?

    kernel = functools.partial(_hybrid_stats_kernel, gamma=gamma, num_classes=C,
                               hw=hw, blocks_per_chunk=S, ragged=ragged)

    est = per_row * ts + 2 * (4 * C * 8 * 128 * 4)
    vmem_limit = int(min(max(2 * est, 24 << 20), 48 << 20))

    per_np = pl.pallas_call(
        kernel,
        out_shape=jax.ShapeDtypeStruct((N * P, 4 * C, 8, 128), jnp.float32),
        grid_spec=pltpu.PrefetchScalarGridSpec(
            num_scalar_prefetch=0,
            grid=(N, P, S),
            in_specs=[
                pl.BlockSpec((1, C, ts, 128), lambda n, p, s: (n, 0, p * S + s, 0)),
                pl.BlockSpec((1, 1, ts, 128), lambda n, p, s: (n, 0, p * S + s, 0)),
            ],
            out_specs=pl.BlockSpec((1, 4 * C, 8, 128),
                                   lambda n, p, s: (n * P + p, 0, 0, 0)),
        ),
        compiler_params=pltpu.CompilerParams(
            dimension_semantics=("parallel", "parallel", "arbitrary"),
            vmem_limit_bytes=vmem_limit),
    )(x4, t4)

    # Tiny epilogue: cross-lane/sublane reduce of the (4, C, 8, 128) partials.
    parts = jnp.sum(jnp.reshape(per_np, (N * P, 4, C, 8, 128)), axis=(0, 3, 4))
    focal_sum = -parts[0]                 # sign flip deferred from the kernel
    tp = parts[1]
    g_sum = parts[2]
    pt_sum = parts[3]
    fn = g_sum - tp
    fp = pt_sum - tp

    m_total = N * hw
    focals = C * focal_sum / m_total
    dices = (tp + smooth) / (tp + alpha * fn + beta * fp + smooth)

    wv = (jnp.ones((C,), jnp.float32) if weight_v is None
          else jnp.asarray(weight_v, jnp.float32))
    # Faithful to the reference forward: final weight = L1-normalized weight_v
    # (the `mask` / `weight_c` products are overwritten in the PyTorch code).
    weight = wv / jnp.maximum(jnp.sum(jnp.abs(wv)), 1e-12)

    return jnp.sum(weight * (1.0 - dices + focals))


def _reference_loss(x, target, gamma=2, alpha=0.5, beta=0.5, smooth=1e-07):
    """Pure-JAX reference mirroring the PyTorch forward (C > 1 path)."""
    N, C = int(x.shape[0]), int(x.shape[1])
    xp = jnp.transpose(jnp.reshape(x, (N, C, -1)), (0, 2, 1)).reshape(-1, C)
    xp = xp.astype(jnp.float32)
    g = jax.nn.one_hot(jnp.reshape(target, (-1,)), C, dtype=jnp.float32)
    logpt = jax.nn.log_softmax(xp, axis=-1)
    pt = jnp.exp(logpt)
    focals = C * jnp.mean(-((1.0 - pt) ** gamma) * g * logpt, axis=0)
    tp = jnp.sum(pt * g, axis=0)
    fn = jnp.sum((1.0 - pt) * g, axis=0)
    fp = jnp.sum(pt * (1.0 - g), axis=0)
    dices = (tp + smooth) / (tp + alpha * fn + beta * fp + smooth)
    weight = jnp.ones((C,), jnp.float32) / C
    return jnp.sum(weight * (1.0 - dices + focals))


if __name__ == "__main__":
    key = jax.random.PRNGKey(0)
    kx, kt = jax.random.split(key)

    N, C, H, W = 2, 4, 16, 16
    x = jax.random.uniform(kx, (N, C, H, W), dtype=jnp.float32)        # 0 <= v <= 1
    target = jax.random.randint(kt, (N, H, W), 0, C, dtype=jnp.int32)  # 0 <= v <= C-1

    loss = jax.block_until_ready(hybrid_loss(x, target))
    ref = jax.block_until_ready(_reference_loss(x, target))
    assert jnp.allclose(loss, ref, atol=1e-5, rtol=1e-5), (loss, ref)

    print("KERNEL_OK")
</pallas_src>

<mosaic_0001>
module attributes {stable_mosaic.version = 11 : i64} {
  func.func @_hybrid_stats_kernel(%arg0: i32, %arg1: i32, %arg2: i32, %arg3: memref<1x4x16x128xf32, #tpu.memory_space<vmem>>, %arg4: memref<1x1x16x128xi32, #tpu.memory_space<vmem>>, %arg5: memref<1x16x8x128xf32, #tpu.memory_space<vmem>>) attributes {dimension_semantics = [#tpu.dimension_semantics<parallel>, #tpu.dimension_semantics<parallel>, #tpu.dimension_semantics<arbitrary>], iteration_bounds = array<i64: 2, 1, 1>, scalar_prefetch = 0 : i64, scratch_operands = 0 : i64, tpu.core_type = #tpu.core_type<tc>, window_params = [{transform_indices = @transform_0, window_bounds = array<i64: 1, 4, 16, 128>}, {transform_indices = @transform_1, window_bounds = array<i64: 1, 1, 16, 128>}, {transform_indices = @transform_2, window_bounds = array<i64: 1, 16, 8, 128>}]} {
    %c0_i32 = arith.constant 0 : i32
    %0 = arith.cmpi eq, %arg2, %c0_i32 : i32
    %1 = arith.extui %0 : i1 to i32
    %c0_i32_0 = arith.constant 0 : i32
    %2 = arith.cmpi ne, %1, %c0_i32_0 : i32
    scf.if %2 {
      %cst_43 = arith.constant 0.000000e+00 : f32
      %112 = vector.broadcast %cst_43 : f32 to vector<1x16x8x128xf32>
      %c0_44 = arith.constant 0 : index
      %c0_45 = arith.constant 0 : index
      %c0_46 = arith.constant 0 : index
      %c0_47 = arith.constant 0 : index
      %113 = vector.load %arg5[%c0_44, %c0_45, %c0_46, %c0_47] : memref<1x16x8x128xf32, #tpu.memory_space<vmem>>, vector<1x16x8x128xf32>
      tpu.vector_store %arg5[%c0_44, %c0_45, %c0_46, %c0_47], %112 {strides = array<i32>} : memref<1x16x8x128xf32, #tpu.memory_space<vmem>>, vector<1x16x8x128xf32>,
    } else {
    }
    %c0 = arith.constant 0 : index
    %c0_1 = arith.constant 0 : index
    %c0_2 = arith.constant 0 : index
    %c0_3 = arith.constant 0 : index
    %3 = vector.load %arg3[%c0, %c0_1, %c0_2, %c0_3] : memref<1x4x16x128xf32, #tpu.memory_space<vmem>>, vector<1x4x16x128xf32>
    %4 = vector.shape_cast %3 : vector<1x4x16x128xf32> to vector<4x16x128xf32>
    %c0_4 = arith.constant 0 : index
    %c0_5 = arith.constant 0 : index
    %c0_6 = arith.constant 0 : index
    %c0_7 = arith.constant 0 : index
    %5 = vector.load %arg4[%c0_4, %c0_5, %c0_6, %c0_7] : memref<1x1x16x128xi32, #tpu.memory_space<vmem>>, vector<1x1x16x128xi32>
    %6 = vector.shape_cast %5 : vector<1x1x16x128xi32> to vector<16x128xi32>
    %c1_i32 = arith.constant 1 : i32
    %7 = arith.muli %arg1, %c1_i32 : i32
    %8 = arith.addi %7, %arg2 : i32
    %9 = tpu.iota {dimensions = array<i32: 0>} : vector<16x128xi32>
    %10 = tpu.iota {dimensions = array<i32: 1>} : vector<16x128xi32>
    %c2048_i32 = arith.constant 2048 : i32
    %11 = arith.muli %8, %c2048_i32 : i32
    %c128_i32 = arith.constant 128 : i32
    %12 = vector.broadcast %c128_i32 : i32 to vector<16x128xi32>
    %13 = arith.muli %9, %12 : vector<16x128xi32>
    %14 = vector.broadcast %11 : i32 to vector<16x128xi32>
    %15 = arith.addi %14, %13 : vector<16x128xi32>
    %16 = arith.addi %15, %10 : vector<16x128xi32>
    %c256_i32 = arith.constant 256 : i32
    %17 = vector.broadcast %c256_i32 : i32 to vector<16x128xi32>
    %18 = arith.cmpi slt, %16, %17 : vector<16x128xi32>
    %c-1_i32 = arith.constant -1 : i32
    %19 = vector.broadcast %c-1_i32 : i32 to vector<16x128xi32>
    %20 = arith.select %18, %6, %19 : vector<16x128xi1>, vector<16x128xi32>
    %21 = vector.extract_strided_slice %4 {offsets = [0, 0, 0], sizes = [1, 16, 128], strides = [1, 1, 1]} : vector<4x16x128xf32> to vector<1x16x128xf32>
    %22 = vector.shape_cast %21 : vector<1x16x128xf32> to vector<16x128xf32>
    %23 = vector.extract_strided_slice %4 {offsets = [1, 0, 0], sizes = [1, 16, 128], strides = [1, 1, 1]} : vector<4x16x128xf32> to vector<1x16x128xf32>
    %24 = vector.shape_cast %23 : vector<1x16x128xf32> to vector<16x128xf32>
    %25 = arith.maximumf %22, %24 : vector<16x128xf32>
    %26 = vector.extract_strided_slice %4 {offsets = [2, 0, 0], sizes = [1, 16, 128], strides = [1, 1, 1]} : vector<4x16x128xf32> to vector<1x16x128xf32>
    %27 = vector.shape_cast %26 : vector<1x16x128xf32> to vector<16x128xf32>
    %28 = arith.maximumf %25, %27 : vector<16x128xf32>
    %29 = vector.extract_strided_slice %4 {offsets = [3, 0, 0], sizes = [1, 16, 128], strides = [1, 1, 1]} : vector<4x16x128xf32> to vector<1x16x128xf32>
    %30 = vector.shape_cast %29 : vector<1x16x128xf32> to vector<16x128xf32>
    %31 = arith.maximumf %28, %30 : vector<16x128xf32>
    %32 = vector.shape_cast %31 : vector<16x128xf32> to vector<1x16x128xf32>
    %33 = vector.broadcast %32 : vector<1x16x128xf32> to vector<4x16x128xf32>
    %34 = arith.subf %4, %33 : vector<4x16x128xf32>
    %35 = math.exp %34 : vector<4x16x128xf32>
    %36 = vector.extract_strided_slice %35 {offsets = [0, 0, 0], sizes = [1, 16, 128], strides = [1, 1, 1]} : vector<4x16x128xf32> to vector<1x16x128xf32>
    %37 = vector.shape_cast %36 : vector<1x16x128xf32> to vector<16x128xf32>
    %38 = vector.extract_strided_slice %35 {offsets = [1, 0, 0], sizes = [1, 16, 128], strides = [1, 1, 1]} : vector<4x16x128xf32> to vector<1x16x128xf32>
    %39 = vector.shape_cast %38 : vector<1x16x128xf32> to vector<16x128xf32>
    %40 = arith.addf %37, %39 : vector<16x128xf32>
    %41 = vector.extract_strided_slice %35 {offsets = [2, 0, 0], sizes = [1, 16, 128], strides = [1, 1, 1]} : vector<4x16x128xf32> to vector<1x16x128xf32>
    %42 = vector.shape_cast %41 : vector<1x16x128xf32> to vector<16x128xf32>
    %43 = arith.addf %40, %42 : vector<16x128xf32>
    %44 = vector.extract_strided_slice %35 {offsets = [3, 0, 0], sizes = [1, 16, 128], strides = [1, 1, 1]} : vector<4x16x128xf32> to vector<1x16x128xf32>
    %45 = vector.shape_cast %44 : vector<1x16x128xf32> to vector<16x128xf32>
    %46 = arith.addf %43, %45 : vector<16x128xf32>
    %cst = arith.constant 1.000000e+00 : f32
    %47 = vector.broadcast %cst : f32 to vector<16x128xf32>
    %48 = arith.divf %47, %46 : vector<16x128xf32>
    %49 = vector.shape_cast %48 : vector<16x128xf32> to vector<1x16x128xf32>
    %50 = vector.broadcast %49 : vector<1x16x128xf32> to vector<4x16x128xf32>
    %51 = arith.mulf %35, %50 : vector<4x16x128xf32>
    %52 = math.log %46 : vector<16x128xf32>
    %53 = vector.shape_cast %52 : vector<16x128xf32> to vector<1x16x128xf32>
    %54 = vector.broadcast %53 : vector<1x16x128xf32> to vector<4x16x128xf32>
    %55 = arith.subf %34, %54 : vector<4x16x128xf32>
    %cst_8 = arith.constant 1.000000e+00 : f32
    %56 = vector.broadcast %cst_8 : f32 to vector<4x16x128xf32>
    %57 = arith.subf %56, %51 : vector<4x16x128xf32>
    %58 = arith.mulf %57, %57 : vector<4x16x128xf32>
    %59 = arith.mulf %58, %55 : vector<4x16x128xf32>
    %60 = tpu.iota {dimensions = array<i32: 0>} : vector<4x16x128xi32>
    %61 = vector.shape_cast %20 : vector<16x128xi32> to vector<1x16x128xi32>
    %62 = vector.broadcast %61 : vector<1x16x128xi32> to vector<4x16x128xi32>
    %63 = arith.cmpi eq, %62, %60 : vector<4x16x128xi32>
    %cst_9 = arith.constant 0.000000e+00 : f32
    %64 = vector.broadcast %cst_9 : f32 to vector<4x16x128xf32>
    %65 = arith.select %63, %59, %64 : vector<4x16x128xi1>, vector<4x16x128xf32>
    %cst_10 = arith.constant 0.000000e+00 : f32
    %66 = vector.broadcast %cst_10 : f32 to vector<4x16x128xf32>
    %67 = arith.select %63, %51, %66 : vector<4x16x128xi1>, vector<4x16x128xf32>
    %cst_11 = arith.constant 1.000000e+00 : f32
    %cst_12 = arith.constant 0.000000e+00 : f32
    %68 = vector.broadcast %cst_11 : f32 to vector<4x16x128xf32>
    %69 = vector.broadcast %cst_12 : f32 to vector<4x16x128xf32>
    %70 = arith.select %63, %68, %69 : vector<4x16x128xi1>, vector<4x16x128xf32>
    %71 = vector.shape_cast %18 : vector<16x128xi1> to vector<1x16x128xi1>
    %cst_13 = arith.constant 0.000000e+00 : f32
    %72 = vector.shape_cast %71 : vector<1x16x128xi1> to vector<1x16x128xi1>
    %73 = vector.broadcast %72 : vector<1x16x128xi1> to vector<4x16x128xi1>
    %74 = vector.broadcast %cst_13 : f32 to vector<4x16x128xf32>
    %75 = arith.select %73, %51, %74 : vector<4x16x128xi1>, vector<4x16x128xf32>
    %c0_14 = arith.constant 0 : index
    %c0_15 = arith.constant 0 : index
    %c0_16 = arith.constant 0 : index
    %c0_17 = arith.constant 0 : index
    %76 = vector.load %arg5[%c0_14, %c0_15, %c0_16, %c0_17] : memref<1x16x8x128xf32, #tpu.memory_space<vmem>>, vector<1x4x8x128xf32>
    %77 = vector.shape_cast %76 : vector<1x4x8x128xf32> to vector<4x8x128xf32>
    %78 = vector.extract_strided_slice %65 {offsets = [0, 0, 0], sizes = [4, 8, 128], strides = [1, 1, 1]} : vector<4x16x128xf32> to vector<4x8x128xf32>
    %79 = vector.extract_strided_slice %65 {offsets = [0, 8, 0], sizes = [4, 8, 128], strides = [1, 1, 1]} : vector<4x16x128xf32> to vector<4x8x128xf32>
    %80 = arith.addf %78, %79 : vector<4x8x128xf32>
    %81 = arith.addf %77, %80 : vector<4x8x128xf32>
    %c0_18 = arith.constant 0 : index
    %c0_19 = arith.constant 0 : index
    %c0_20 = arith.constant 0 : index
    %c0_21 = arith.constant 0 : index
    %82 = vector.load %arg5[%c0_18, %c0_19, %c0_20, %c0_21] : memref<1x16x8x128xf32, #tpu.memory_space<vmem>>, vector<1x4x8x128xf32>
    %83 = vector.shape_cast %82 : vector<1x4x8x128xf32> to vector<4x8x128xf32>
    %84 = vector.shape_cast %81 : vector<4x8x128xf32> to vector<1x4x8x128xf32>
    tpu.vector_store %arg5[%c0_18, %c0_19, %c0_20, %c0_21], %84 {strides = array<i32>} : memref<1x16x8x128xf32, #tpu.memory_space<vmem>>, vector<1x4x8x128xf32>,
    %c0_22 = arith.constant 0 : index
    %c4 = arith.constant 4 : index
    %c0_23 = arith.constant 0 : index
    %c0_24 = arith.constant 0 : index
    %85 = vector.load %arg5[%c0_22, %c4, %c0_23, %c0_24] : memref<1x16x8x128xf32, #tpu.memory_space<vmem>>, vector<1x4x8x128xf32>
    %86 = vector.shape_cast %85 : vector<1x4x8x128xf32> to vector<4x8x128xf32>
    %87 = vector.extract_strided_slice %67 {offsets = [0, 0, 0], sizes = [4, 8, 128], strides = [1, 1, 1]} : vector<4x16x128xf32> to vector<4x8x128xf32>
    %88 = vector.extract_strided_slice %67 {offsets = [0, 8, 0], sizes = [4, 8, 128], strides = [1, 1, 1]} : vector<4x16x128xf32> to vector<4x8x128xf32>
    %89 = arith.addf %87, %88 : vector<4x8x128xf32>
    %90 = arith.addf %86, %89 : vector<4x8x128xf32>
    %c0_25 = arith.constant 0 : index
    %c4_26 = arith.constant 4 : index
    %c0_27 = arith.constant 0 : index
    %c0_28 = arith.constant 0 : index
    %91 = vector.load %arg5[%c0_25, %c4_26, %c0_27, %c0_28] : memref<1x16x8x128xf32, #tpu.memory_space<vmem>>, vector<1x4x8x128xf32>
    %92 = vector.shape_cast %91 : vector<1x4x8x128xf32> to vector<4x8x128xf32>
    %93 = vector.shape_cast %90 : vector<4x8x128xf32> to vector<1x4x8x128xf32>
    tpu.vector_store %arg5[%c0_25, %c4_26, %c0_27, %c0_28], %93 {strides = array<i32>} : memref<1x16x8x128xf32, #tpu.memory_space<vmem>>, vector<1x4x8x128xf32>,
    %c0_29 = arith.constant 0 : index
    %c8 = arith.constant 8 : index
    %c0_30 = arith.constant 0 : index
    %c0_31 = arith.constant 0 : index
    %94 = vector.load %arg5[%c0_29, %c8, %c0_30, %c0_31] : memref<1x16x8x128xf32, #tpu.memory_space<vmem>>, vector<1x4x8x128xf32>
    %95 = vector.shape_cast %94 : vector<1x4x8x128xf32> to vector<4x8x128xf32>
    %96 = vector.extract_strided_slice %70 {offsets = [0, 0, 0], sizes = [4, 8, 128], strides = [1, 1, 1]} : vector<4x16x128xf32> to vector<4x8x128xf32>
    %97 = vector.extract_strided_slice %70 {offsets = [0, 8, 0], sizes = [4, 8, 128], strides = [1, 1, 1]} : vector<4x16x128xf32> to vector<4x8x128xf32>
    %98 = arith.addf %96, %97 : vector<4x8x128xf32>
    %99 = arith.addf %95, %98 : vector<4x8x128xf32>
    %c0_32 = arith.constant 0 : index
    %c8_33 = arith.constant 8 : index
    %c0_34 = arith.constant 0 : index
    %c0_35 = arith.constant 0 : index
    %100 = vector.load %arg5[%c0_32, %c8_33, %c0_34, %c0_35] : memref<1x16x8x128xf32, #tpu.memory_space<vmem>>, vector<1x4x8x128xf32>
    %101 = vector.shape_cast %100 : vector<1x4x8x128xf32> to vector<4x8x128xf32>
    %102 = vector.shape_cast %99 : vector<4x8x128xf32> to vector<1x4x8x128xf32>
    tpu.vector_store %arg5[%c0_32, %c8_33, %c0_34, %c0_35], %102 {strides = array<i32>} : memref<1x16x8x128xf32, #tpu.memory_space<vmem>>, vector<1x4x8x128xf32>,
    %c0_36 = arith.constant 0 : index
    %c12 = arith.constant 12 : index
    %c0_37 = arith.constant 0 : index
    %c0_38 = arith.constant 0 : index
    %103 = vector.load %arg5[%c0_36, %c12, %c0_37, %c0_38] : memref<1x16x8x128xf32, #tpu.memory_space<vmem>>, vector<1x4x8x128xf32>
    %104 = vector.shape_cast %103 : vector<1x4x8x128xf32> to vector<4x8x128xf32>
    %105 = vector.extract_strided_slice %75 {offsets = [0, 0, 0], sizes = [4, 8, 128], strides = [1, 1, 1]} : vector<4x16x128xf32> to vector<4x8x128xf32>
    %106 = vector.extract_strided_slice %75 {offsets = [0, 8, 0], sizes = [4, 8, 128], strides = [1, 1, 1]} : vector<4x16x128xf32> to vector<4x8x128xf32>
    %107 = arith.addf %105, %106 : vector<4x8x128xf32>
    %108 = arith.addf %104, %107 : vector<4x8x128xf32>
    %c0_39 = arith.constant 0 : index
    %c12_40 = arith.constant 12 : index
    %c0_41 = arith.constant 0 : index
    %c0_42 = arith.constant 0 : index
    %109 = vector.load %arg5[%c0_39, %c12_40, %c0_41, %c0_42] : memref<1x16x8x128xf32, #tpu.memory_space<vmem>>, vector<1x4x8x128xf32>
    %110 = vector.shape_cast %109 : vector<1x4x8x128xf32> to vector<4x8x128xf32>
    %111 = vector.shape_cast %108 : vector<4x8x128xf32> to vector<1x4x8x128xf32>
    tpu.vector_store %arg5[%c0_39, %c12_40, %c0_41, %c0_42], %111 {strides = array<i32>} : memref<1x16x8x128xf32, #tpu.memory_space<vmem>>, vector<1x4x8x128xf32>,
    return
  }
  func.func @transform_0(%arg0: i32, %arg1: i32, %arg2: i32) -> (i32, i32, i32, i32) {
    %c1_i32 = arith.constant 1 : i32
    %0 = arith.muli %arg1, %c1_i32 : i32
    %1 = arith.addi %0, %arg2 : i32
    %c0_i32 = arith.constant 0 : i32
    %c0_i32_0 = arith.constant 0 : i32
    %c0_i32_1 = arith.constant 0 : i32
    return %arg0, %c0_i32, %1, %c0_i32_0 : i32, i32, i32, i32
  }
  func.func @transform_1(%arg0: i32, %arg1: i32, %arg2: i32) -> (i32, i32, i32, i32) {
    %c1_i32 = arith.constant 1 : i32
    %0 = arith.muli %arg1, %c1_i32 : i32
    %1 = arith.addi %0, %arg2 : i32
    %c0_i32 = arith.constant 0 : i32
    %c0_i32_0 = arith.constant 0 : i32
    %c0_i32_1 = arith.constant 0 : i32
    return %arg0, %c0_i32, %1, %c0_i32_0 : i32, i32, i32, i32
  }
  func.func @transform_2(%arg0: i32, %arg1: i32, %arg2: i32) -> (i32, i32, i32, i32) {
    %c1_i32 = arith.constant 1 : i32
    %0 = arith.muli %arg0, %c1_i32 : i32
    %1 = arith.addi %0, %arg1 : i32
    %c0_i32 = arith.constant 0 : i32
    %c0_i32_0 = arith.constant 0 : i32
    %c0_i32_1 = arith.constant 0 : i32
    %c0_i32_2 = arith.constant 0 : i32
    return %1, %c0_i32, %c0_i32_0, %c0_i32_1 : i32, i32, i32, i32
  }
}

</mosaic_0001>

<llo_original>
// kernel: tpu_custom_call.1
$region0: #{tpu_custom_call.1}
  #allocation0 [shape = 'u32[]', space=smem, size = 0x4, offset = 0x4, fixed_abs, tag = 'smem constant byte address 0x4 - core index']
  #allocation1 [shape = 'u32[144,128]{1,0:T(1,128)}', space=vmem, size = 0x12000, scoped, tag = 'internal scratch']
  %s0 = inlined_call_operand.hbm [shape: f32[2,4,16,128], index: 0, kind: input, shape index: {}]
  %s1 = inlined_call_operand.hbm [shape: s32[2,1,16,128], index: 1, kind: input, shape index: {}]
  %s2 = inlined_call_operand.hbm [shape: f32[2,16,8,128], index: 2, kind: output, shape index: {}]
  %s3 = sld [smem:[#allocation0]]
  $region53: #{tpu_custom_call.1} parent=0
    _
  %s5 = ssub.s32 1, %s3
  %s6 = scalar_select 0, %s5, %s3
  $region1: #{tpu_custom_call.1} parent=0
    #allocation2 [shape = 'u8[65536]{0}', space=vmem, size = 0x10000, scoped, tag = 'input window, operand 0']
    #allocation3 [shape = 's32[2]{0}', space=sflag, size = 0x8, scoped, tag = 'scoped memory for tpu_custom_call.1']
    #allocation4 [shape = 's32[2]{0}', space=sflag, size = 0x8, scoped, tag = 'scoped memory for tpu_custom_call.1']
    #allocation5 [shape = 'u8[16384]{0}', space=vmem, size = 0x4000, scoped, tag = 'input window, operand 1']
    #allocation6 [shape = 's32[2]{0}', space=sflag, size = 0x8, scoped, tag = 'scoped memory for tpu_custom_call.1']
    #allocation7 [shape = 'u8[131072]{0}', space=vmem, size = 0x20000, scoped, tag = 'output window, operand 0']
    %7 = vsyncpa [#allocation3], 0
    %s8 = scalar_lea.sflag [#allocation3], 1
    %9 = vsyncpa %s8, 0
    %10 = vsyncpa [#allocation6], 0
    %s11 = scalar_lea.sflag [#allocation6], 1
    %12 = vsyncpa %s11, 0
    %13 = vsyncpa [#allocation4], 0
    %s14 = scalar_lea.sflag [#allocation4], 1
    %15 = vsyncpa %s14, 0
    loop: start=0, step=1, limit=4
    $region2: #{tpu_custom_call.1} parent=1 // loop_pre_header
      _
    $region3: #{tpu_custom_call.1} parent=1 // loop_header
      %s17 = sphi 0, %s21
      %p18 = scmp.ge.s32.totalorder %s17, 4
      %s24 = sphi 0, %s43
      %s25 = sphi 0, %s39
      %s26 = sphi 0, %s35
      %s27 = sphi 0, %s24
      %s28 = sphi 0, %s25
      %s29 = sphi 0, %s26
      %s30 = sphi 0, %s27
      %s31 = sphi 0, %s28
      %s32 = sphi 0, %s29
      %s50 = sphi 0, %s52
      %s53 = sphi 0, %s50
      %s54 = sphi 0, %s53
      %s70 = sphi 0, %s54
      %s80 = sphi 0, %s82
      %s83 = sphi 0, %s80
      %s84 = sphi 0, %s83
      %s100 = sphi 0, %s84
      %s108 = sphi 0, %s110
      %s111 = sphi 0, %s108
      %s112 = sphi 0, %s111
      %s128 = sphi 0, %s112
    $region4: #{tpu_custom_call.1} parent=1 // loop_header_branch
      %20 = sbr.rel (%p18) target = $region8
    $region5: #{tpu_custom_call.1} parent=1 // loop_body
      %s22 = ssub.s32 %s17, 1
      %s23 = ssub.s32 %s17, 2
      %s33 = sadd.s32 1, %s26
      %p34 = scmp.ge.s32.totalorder %s33, 1
      %s35 = scalar_select %p34, 0, %s33
      %s36 = sadd.s32 1, %s25
      %s37 = scalar_select %p34, %s36, %s25
      %p38 = scmp.ge.s32.totalorder %s37, 1
      %s39 = scalar_select %p38, 0, %s37
      %s40 = sadd.s32 1, %s24
      %s41 = scalar_select %p38, %s40, %s24
      %p42 = scmp.ge.s32.totalorder %s41, 2
      %s43 = scalar_select %p42, 0, %s41
      %s44 = sadd.s32 %s25, %s26
      %s45 = sadd.s32 %s39, %s35
      %s46 = ssub.s32 %s24, %s43
      %s47 = ssub.s32 %s44, %s45
      %s48 = sor.u32 %s46, %s47
      %p49 = scmp.eq.s32.totalorder %s48, 0
      %s51 = sadd.s32 %s50, 1
      %s52 = scalar_select %p49, %s50, %s51
      %p55 = pneg %p49
      %p56 = scmp.eq.s32.totalorder %s17, 1
      %p57 = por %p55, %p56
      %p58 = scmp.ne.s32.totalorder %s50, %s53
      %p59 = scmp.eq.s32.totalorder %s17, 0
      %p60 = por %p58, %p59
      %p61 = scmp.ne.s32.totalorder %s50, %s53
      %p62 = scmp.eq.s32.totalorder %s22, 1
      %p63 = por %p61, %p62
      %p64 = scmp.ne.s32.totalorder %s53, %s54
      %p65 = scmp.eq.s32.totalorder %s22, 0
      %p66 = por %p64, %p65
      %p67 = scmp.ne.s32.totalorder %s53, %s54
      %p68 = scmp.eq.s32.totalorder %s23, 1
      %p69 = por %p67, %p68
      %p71 = scmp.ne.s32.totalorder %s54, %s70
      %p72 = scmp.eq.s32.totalorder %s23, 0
      %p73 = por %p71, %p72
      %s74 = sadd.s32 %s25, %s26
      %s75 = sadd.s32 %s39, %s35
      %s76 = ssub.s32 %s24, %s43
      %s77 = ssub.s32 %s74, %s75
      %s78 = sor.u32 %s76, %s77
      %p79 = scmp.eq.s32.totalorder %s78, 0
      %s81 = sadd.s32 %s80, 1
      %s82 = scalar_select %p79, %s80, %s81
      %p85 = pneg %p79
      %p86 = scmp.eq.s32.totalorder %s17, 1
      %p87 = por %p85, %p86
      %p88 = scmp.ne.s32.totalorder %s80, %s83
      %p89 = scmp.eq.s32.totalorder %s17, 0
      %p90 = por %p88, %p89
      %p91 = scmp.ne.s32.totalorder %s80, %s83
      %p92 = scmp.eq.s32.totalorder %s22, 1
      %p93 = por %p91, %p92
      %p94 = scmp.ne.s32.totalorder %s83, %s84
      %p95 = scmp.eq.s32.totalorder %s22, 0
      %p96 = por %p94, %p95
      %p97 = scmp.ne.s32.totalorder %s83, %s84
      %p98 = scmp.eq.s32.totalorder %s23, 1
      %p99 = por %p97, %p98
      %p101 = scmp.ne.s32.totalorder %s84, %s100
      %p102 = scmp.eq.s32.totalorder %s23, 0
      %p103 = por %p101, %p102
      %s104 = sadd.s32 %s24, %s25
      %s105 = sadd.s32 %s43, %s39
      %s106 = ssub.s32 %s104, %s105
      %p107 = scmp.eq.s32.totalorder %s106, 0
      %s109 = sadd.s32 %s108, 1
      %s110 = scalar_select %p107, %s108, %s109
      %p113 = pneg %p107
      %p114 = scmp.eq.s32.totalorder %s17, 1
      %p115 = por %p113, %p114
      %p116 = scmp.ne.s32.totalorder %s108, %s111
      %p117 = scmp.eq.s32.totalorder %s17, 0
      %p118 = por %p116, %p117
      %p119 = scmp.ne.s32.totalorder %s108, %s111
      %p120 = scmp.eq.s32.totalorder %s22, 1
      %p121 = por %p119, %p120
      %p122 = scmp.ne.s32.totalorder %s111, %s112
      %p123 = scmp.eq.s32.totalorder %s22, 0
      %p124 = por %p122, %p123
      %p125 = scmp.ne.s32.totalorder %s111, %s112
      %p126 = scmp.eq.s32.totalorder %s23, 1
      %p127 = por %p125, %p126
      %p129 = scmp.ne.s32.totalorder %s112, %s128
      %p130 = scmp.eq.s32.totalorder %s23, 0
      %p131 = por %p129, %p130
      %p132 = scmp.le.s32.totalorder 1, %s17
      %p133 = scmp.lt.s32.totalorder %s17, 3
      %p134 = pnand %p132, %p133
      %p135 = pneg %p134
      // Predicated region
      $region9: #{tpu_custom_call.1} parent=5 // pred_check
        _
      $region10: #{tpu_custom_call.1} parent=5 // pred_check_branch
        %137 = sbr.rel (%p134) target = $region12
      $region11: #{tpu_custom_call.1} parent=5 // pred_region
        %s138 = ssub.s32 %s17, 1
      $region12: #{tpu_custom_call.1} parent=5 // pred_fallthru
        _
      %p139 = scmp.lt.s32.totalorder %s17, 2
      // Predicated region
      $region13: #{tpu_custom_call.1} parent=5 // pred_check
        %p140 = pneg %p139
      $region14: #{tpu_custom_call.1} parent=5 // pred_check_branch
        %142 = sbr.rel (%p140) target = $region16
      $region15: #{tpu_custom_call.1} parent=5 // pred_region
        // Predicated region
        $region17: #{tpu_custom_call.1} parent=15 // pred_check
          %p143 = pneg %p60
        $region18: #{tpu_custom_call.1} parent=15 // pred_check_branch
          %145 = sbr.rel (%p143) target = $region20
        $region19: #{tpu_custom_call.1} parent=15 // pred_region
          %s146 = sand.u32 %s50, 1
          %s147 = scalar_lea.sflag [#allocation3], %s146
          %s148 = sand.u32 %s50, 1
          %s149 = smul.addr %s148, 64
          %s150 = scalar_lea.vmem [#allocation2], %s149
          %s151 = sadd.s32 %s25, %s26
          %s152 = smul.u32 2, %s151
          %s154 = ssub.s32 1024, 1024
          %155 = vsyncadd %s147, %s154
          %s156 = smul.addr %s24, 8
          %s157 = sadd.s32 %s152, %s156
          %s158 = smul.addr %s157, 128
          %s159 = scalar_lea.hbm %s0, %s158
          %s160 = sshll.u32 %s150, 4
          %s161 = int_to_ptr.vmem [resolvable:$true] %s160
          %166 = dma.hbm_to_vmem [thread:$0]  %s159, 1024, %s161, %s147, 128, 128, 8
        $region20: #{tpu_custom_call.1} parent=15 // pred_fallthru
          _
        // Predicated region
        $region21: #{tpu_custom_call.1} parent=15 // pred_check
          %p167 = pneg %p90
        $region22: #{tpu_custom_call.1} parent=15 // pred_check_branch
          %169 = sbr.rel (%p167) target = $region24
        $region23: #{tpu_custom_call.1} parent=15 // pred_region
          %s170 = sand.u32 %s80, 1
          %s171 = scalar_lea.sflag [#allocation6], %s170
          %s172 = sand.u32 %s80, 1
          %s173 = smul.addr %s172, 16
          %s174 = scalar_lea.vmem [#allocation5], %s173
          %s175 = sadd.s32 %s25, %s26
          %s176 = smul.u32 2, %s175
          %s178 = ssub.s32 256, 256
          %179 = vsyncadd %s171, %s178
          %s180 = smul.addr %s24, 2
          %s181 = sadd.s32 %s176, %s180
          %s182 = smul.addr %s181, 128
          %s183 = scalar_lea.hbm %s1, %s182
          %s184 = sshll.u32 %s174, 4
          %s185 = int_to_ptr.vmem [resolvable:$true] %s184
          %190 = dma.hbm_to_vmem [thread:$0]  %s183, 256, %s185, %s171, 128, 128, 8
        $region24: #{tpu_custom_call.1} parent=15 // pred_fallthru
          _
      $region16: #{tpu_custom_call.1} parent=5 // pred_fallthru
        _
      %p191 = scmp.le.s32.totalorder 1, %s17
      %p192 = scmp.lt.s32.totalorder %s17, 3
      %p193 = pnand %p191, %p192
      %p194 = pneg %p193
      // Predicated region
      $region25: #{tpu_custom_call.1} parent=5 // pred_check
        _
      $region26: #{tpu_custom_call.1} parent=5 // pred_check_branch
        %196 = sbr.rel (%p193) target = $region28
      $region27: #{tpu_custom_call.1} parent=5 // pred_region
        %s197 = ssub.s32 %s17, 1
        %s198 = sand.u32 %s53, 1
        %s199 = scalar_lea.sflag [#allocation3], %s198
        %s200 = sand.u32 %s53, 1
        %s201 = smul.addr %s200, 64
        %s202 = scalar_lea.vmem [#allocation2], %s201
        // Predicated region
        $region29: #{tpu_custom_call.1} parent=27 // pred_check
          %p203 = pneg %p66
        $region30: #{tpu_custom_call.1} parent=27 // pred_check_branch
          %205 = sbr.rel (%p203) target = $region32
        $region31: #{tpu_custom_call.1} parent=27 // pred_region
          %206 = dma.done %s199, 1024
        $region32: #{tpu_custom_call.1} parent=27 // pred_fallthru
          _
        %s207 = sand.u32 %s83, 1
        %s208 = scalar_lea.sflag [#allocation6], %s207
        %s209 = sand.u32 %s83, 1
        %s210 = smul.addr %s209, 16
        %s211 = scalar_lea.vmem [#allocation5], %s210
        // Predicated region
        $region33: #{tpu_custom_call.1} parent=27 // pred_check
          %p212 = pneg %p96
        $region34: #{tpu_custom_call.1} parent=27 // pred_check_branch
          %214 = sbr.rel (%p212) target = $region36
        $region35: #{tpu_custom_call.1} parent=27 // pred_region
          %215 = dma.done %s208, 256
        $region36: #{tpu_custom_call.1} parent=27 // pred_fallthru
          _
        %s216 = sand.u32 %s53, 1
        %s217 = scalar_lea.sflag [#allocation3], %s216
        %s218 = sand.u32 %s53, 1
        %s219 = smul.addr %s218, 64
        %s220 = scalar_lea.vmem [#allocation2], %s219
        %p221 = pneg %p66
        %p222 = pneg %p63
        %s223 = sand.u32 %s83, 1
        %s224 = scalar_lea.sflag [#allocation6], %s223
        %s225 = sand.u32 %s83, 1
        %s226 = smul.addr %s225, 16
        %s227 = scalar_lea.vmem [#allocation5], %s226
        %p228 = pneg %p96
        %p229 = pneg %p93
        %p230 = pneg %p124
        %p231 = pneg %p121
        %s232 = sand.u32 %s111, 1
        %s233 = scalar_lea.sflag [#allocation4], %s232
        %s234 = sand.u32 %s111, 1
        %s235 = smul.addr %s234, 128
        %s236 = scalar_lea.vmem [#allocation7], %s235
        %s237 = sadd.s32 %s28, %s29
        %s238 = smul.u32 2, %s237
        %s239 = sadd.s32 %s28, %s29
        %s240 = smul.u32 2, %s239
        %s241 = sadd.s32 %s27, %s28
        %p242 = scmp.eq.s32.totalorder %s29, 0
        // Predicated region
        $region37: #{tpu_custom_call.1} parent=27 // pred_check
          %p243 = pneg %p242
        $region38: #{tpu_custom_call.1} parent=27 // pred_check_branch
          %245 = sbr.rel (%p243) target = $region40
        $region39: #{tpu_custom_call.1} parent=27 // pred_region
          %246 = vst [vmem:[%s236] sm:$0xff] 0.0
          %247 = vst [vmem:[%s236 + $0x8] sm:$0xff] 0.0
          %248 = vst [vmem:[%s236 + $0x10] sm:$0xff] 0.0
          %249 = vst [vmem:[%s236 + $0x18] sm:$0xff] 0.0
          %250 = vst [vmem:[%s236 + $0x20] sm:$0xff] 0.0
          %251 = vst [vmem:[%s236 + $0x28] sm:$0xff] 0.0
          %252 = vst [vmem:[%s236 + $0x30] sm:$0xff] 0.0
          %253 = vst [vmem:[%s236 + $0x38] sm:$0xff] 0.0
          %254 = vst [vmem:[%s236 + $0x40] sm:$0xff] 0.0
          %255 = vst [vmem:[%s236 + $0x48] sm:$0xff] 0.0
          %256 = vst [vmem:[%s236 + $0x50] sm:$0xff] 0.0
          %257 = vst [vmem:[%s236 + $0x58] sm:$0xff] 0.0
          %258 = vst [vmem:[%s236 + $0x60] sm:$0xff] 0.0
          %259 = vst [vmem:[%s236 + $0x68] sm:$0xff] 0.0
          %260 = vst [vmem:[%s236 + $0x70] sm:$0xff] 0.0
          %261 = vst [vmem:[%s236 + $0x78] sm:$0xff] 0.0
        $region40: #{tpu_custom_call.1} parent=27 // pred_fallthru
          _
        %v262 = vld [vmem:[%s202] sm:$0xff]
        %v263 = vld [vmem:[%s202 + $0x8] sm:$0xff]
        %v264 = vld [vmem:[%s202 + $0x10] sm:$0xff]
        %v265 = vld [vmem:[%s202 + $0x18] sm:$0xff]
        %v266 = vld [vmem:[%s202 + $0x20] sm:$0xff]
        %v267 = vld [vmem:[%s202 + $0x28] sm:$0xff]
        %v268 = vld [vmem:[%s202 + $0x30] sm:$0xff]
        %v269 = vld [vmem:[%s202 + $0x38] sm:$0xff]
        %v270 = vld [vmem:[%s211] sm:$0xff]
        %v271 = vld [vmem:[%s211 + $0x8] sm:$0xff]
        %s272 = sadd.s32 %s28, %s29
        %v273 = vlaneseq
        %v274 = vshrl.u32 %v273, 7
        %v275 = vadd.s32 %v274, 8
        %v276 = vlaneseq
        %v277 = vand.u32 %v276, 127
        %s278 = smul.u32 %s272, 2048
        %v279 = vmul.u32 %v274, 128
        %v280 = vmul.u32 %v275, 128
        %v281 = vstv %s278
        %v282 = vadd.s32 %v281, %v279
        %v283 = vadd.s32 %v281, %v280
        %v284 = vadd.s32 %v282, %v277
        %v285 = vadd.s32 %v283, %v277
        %vm286 = vcmp.lt.s32.totalorder %v284, 256
        %vm287 = vcmp.lt.s32.totalorder %v285, 256
        %v288 = vsel %vm286, %v270, 4294967295
        %v289 = vsel %vm287, %v271, 4294967295
        %v290 = vmax.f32 %v262, %v264
        %v291 = vmax.f32 %v263, %v265
        %v292 = vmax.f32 %v290, %v266
        %v293 = vmax.f32 %v291, %v267
        %v294 = vmax.f32 %v292, %v268
        %v295 = vmax.f32 %v293, %v269
        %v296 = vsub.f32 %v262, %v294
        %v297 = vsub.f32 %v263, %v295
        %v298 = vsub.f32 %v264, %v294
        %v299 = vsub.f32 %v265, %v295
        %v300 = vsub.f32 %v266, %v294
        %v301 = vsub.f32 %v267, %v295
        %v302 = vsub.f32 %v268, %v294
        %v303 = vsub.f32 %v269, %v295
        %v304 = vmul.f32 %v296, 1.442695
        %v305 = vpow.pop %v304
        %v306 = vmul.f32 %v297, 1.442695
        %v307 = vpow.pop %v306
        %v308 = vmul.f32 %v298, 1.442695
        %v309 = vpow.pop %v308
        %v310 = vmul.f32 %v299, 1.442695
        %v311 = vpow.pop %v310
        %v312 = vmul.f32 %v300, 1.442695
        %v313 = vpow.pop %v312
        %v314 = vmul.f32 %v301, 1.442695
        %v315 = vpow.pop %v314
        %v316 = vmul.f32 %v302, 1.442695
        %v317 = vpow.pop %v316
        %v318 = vmul.f32 %v303, 1.442695
        %v319 = vpow.pop %v318
        %v320 = vadd.f32 %v305, %v309
        %v321 = vadd.f32 %v307, %v311
        %v322 = vadd.f32 %v320, %v313
        %v323 = vadd.f32 %v321, %v315
        %v324 = vadd.f32 %v322, %v317
        %v325 = vadd.f32 %v323, %v319
        %v326 = vrcp.pop %v324
        %v327 = vmul.f32 1.0, %v326
        %v328 = vrcp.pop %v325
        %v329 = vmul.f32 1.0, %v328
        %v330 = vmul.f32 %v305, %v327
        %v331 = vmul.f32 %v307, %v329
        %v332 = vmul.f32 %v309, %v327
        %v333 = vmul.f32 %v311, %v329
        %v334 = vmul.f32 %v313, %v327
        %v335 = vmul.f32 %v315, %v329
        %v336 = vmul.f32 %v317, %v327
        %v337 = vmul.f32 %v319, %v329
        %v338 = vlog2.pop %v324
        %v339 = vmul.f32 %v338, 0.6931472
        %v340 = vlog2.pop %v325
        %v341 = vmul.f32 %v340, 0.6931472
        %v342 = vsub.f32 %v296, %v339
        %v343 = vsub.f32 %v297, %v341
        %v344 = vsub.f32 %v298, %v339
        %v345 = vsub.f32 %v299, %v341
        %v346 = vsub.f32 %v300, %v339
        %v347 = vsub.f32 %v301, %v341
        %v348 = vsub.f32 %v302, %v339
        %v349 = vsub.f32 %v303, %v341
        %v350 = vsub.f32 1.0, %v330
        %v351 = vsub.f32 1.0, %v331
        %v352 = vsub.f32 1.0, %v332
        %v353 = vsub.f32 1.0, %v333
        %v354 = vsub.f32 1.0, %v334
        %v355 = vsub.f32 1.0, %v335
        %v356 = vsub.f32 1.0, %v336
        %v357 = vsub.f32 1.0, %v337
        %v358 = vmul.f32 %v350, %v350
        %v359 = vmul.f32 %v351, %v351
        %v360 = vmul.f32 %v352, %v352
        %v361 = vmul.f32 %v353, %v353
        %v362 = vmul.f32 %v354, %v354
        %v363 = vmul.f32 %v355, %v355
        %v364 = vmul.f32 %v356, %v356
        %v365 = vmul.f32 %v357, %v357
        %v366 = vmul.f32 %v358, %v342
        %v367 = vmul.f32 %v359, %v343
        %v368 = vmul.f32 %v360, %v344
        %v369 = vmul.f32 %v361, %v345
        %v370 = vmul.f32 %v362, %v346
        %v371 = vmul.f32 %v363, %v347
        %v372 = vmul.f32 %v364, %v348
        %v373 = vmul.f32 %v365, %v349
        %vm374 = vcmp.eq.s32.totalorder %v288, 0
        %vm375 = vcmp.eq.s32.totalorder %v289, 0
        %vm376 = vcmp.eq.s32.totalorder %v288, 1
        %vm377 = vcmp.eq.s32.totalorder %v289, 1
        %vm378 = vcmp.eq.s32.totalorder %v288, 2
        %vm379 = vcmp.eq.s32.totalorder %v289, 2
        %vm380 = vcmp.eq.s32.totalorder %v288, 3
        %vm381 = vcmp.eq.s32.totalorder %v289, 3
        %v382 = vsel %vm374, %v366, 0.0
        %v383 = vsel %vm375, %v367, 0.0
        %v384 = vsel %vm376, %v368, 0.0
        %v385 = vsel %vm377, %v369, 0.0
        %v386 = vsel %vm378, %v370, 0.0
        %v387 = vsel %vm379, %v371, 0.0
        %v388 = vsel %vm380, %v372, 0.0
        %v389 = vsel %vm381, %v373, 0.0
        %v390 = vsel %vm374, %v330, 0.0
        %v391 = vsel %vm375, %v331, 0.0
        %v392 = vsel %vm376, %v332, 0.0
        %v393 = vsel %vm377, %v333, 0.0
        %v394 = vsel %vm378, %v334, 0.0
        %v395 = vsel %vm379, %v335, 0.0
        %v396 = vsel %vm380, %v336, 0.0
        %v397 = vsel %vm381, %v337, 0.0
        %v398 = vsel %vm374, 1.0, 0.0
        %v399 = vsel %vm375, 1.0, 0.0
        %v400 = vsel %vm376, 1.0, 0.0
        %v401 = vsel %vm377, 1.0, 0.0
        %v402 = vsel %vm378, 1.0, 0.0
        %v403 = vsel %vm379, 1.0, 0.0
        %v404 = vsel %vm380, 1.0, 0.0
        %v405 = vsel %vm381, 1.0, 0.0
        %v406 = vsel %vm286, 1, 0
        %v407 = vsel %vm287, 1, 0
        %vm408 = vcmp.eq.s32.totalorder %v406, 1
        %vm409 = vcmp.eq.s32.totalorder %v407, 1
        %v410 = vsel %vm408, %v330, 0.0
        %v411 = vsel %vm409, %v331, 0.0
        %v412 = vsel %vm408, %v332, 0.0
        %v413 = vsel %vm409, %v333, 0.0
        %v414 = vsel %vm408, %v334, 0.0
        %v415 = vsel %vm409, %v335, 0.0
        %v416 = vsel %vm408, %v336, 0.0
        %v417 = vsel %vm409, %v337, 0.0
        %v418 = vld [vmem:[%s236] sm:$0xff]
        %v419 = vld [vmem:[%s236 + $0x8] sm:$0xff]
        %v420 = vld [vmem:[%s236 + $0x10] sm:$0xff]
        %v421 = vld [vmem:[%s236 + $0x18] sm:$0xff]
        %v422 = vadd.f32 %v382, %v383
        %v423 = vadd.f32 %v384, %v385
        %v424 = vadd.f32 %v386, %v387
        %v425 = vadd.f32 %v388, %v389
        %v426 = vadd.f32 %v418, %v422
        %v427 = vadd.f32 %v419, %v423
        %v428 = vadd.f32 %v420, %v424
        %v429 = vadd.f32 %v421, %v425
        %430 = vst [vmem:[%s236] sm:$0xff] %v426
        %431 = vst [vmem:[%s236 + $0x8] sm:$0xff] %v427
        %432 = vst [vmem:[%s236 + $0x10] sm:$0xff] %v428
        %433 = vst [vmem:[%s236 + $0x18] sm:$0xff] %v429
        %s434 = scalar_lea.vmem %s236, 32 [#allocation7]
        %v435 = vld [vmem:[%s434] sm:$0xff]
        %v436 = vld [vmem:[%s434 + $0x8] sm:$0xff]
        %v437 = vld [vmem:[%s434 + $0x10] sm:$0xff]
        %v438 = vld [vmem:[%s434 + $0x18] sm:$0xff]
        %v439 = vadd.f32 %v390, %v391
        %v440 = vadd.f32 %v392, %v393
        %v441 = vadd.f32 %v394, %v395
        %v442 = vadd.f32 %v396, %v397
        %v443 = vadd.f32 %v435, %v439
        %v444 = vadd.f32 %v436, %v440
        %v445 = vadd.f32 %v437, %v441
        %v446 = vadd.f32 %v438, %v442
        %447 = vst [vmem:[%s434] sm:$0xff] %v443
        %448 = vst [vmem:[%s434 + $0x8] sm:$0xff] %v444
        %449 = vst [vmem:[%s434 + $0x10] sm:$0xff] %v445
        %450 = vst [vmem:[%s434 + $0x18] sm:$0xff] %v446
        %s451 = scalar_lea.vmem %s236, 64 [#allocation7]
        %v452 = vld [vmem:[%s451] sm:$0xff]
        %v453 = vld [vmem:[%s451 + $0x8] sm:$0xff]
        %v454 = vld [vmem:[%s451 + $0x10] sm:$0xff]
        %v455 = vld [vmem:[%s451 + $0x18] sm:$0xff]
        %v456 = vadd.f32 %v398, %v399
        %v457 = vadd.f32 %v400, %v401
        %v458 = vadd.f32 %v402, %v403
        %v459 = vadd.f32 %v404, %v405
        %v460 = vadd.f32 %v452, %v456
        %v461 = vadd.f32 %v453, %v457
        %v462 = vadd.f32 %v454, %v458
        %v463 = vadd.f32 %v455, %v459
        %464 = vst [vmem:[%s451] sm:$0xff] %v460
        %465 = vst [vmem:[%s451 + $0x8] sm:$0xff] %v461
        %466 = vst [vmem:[%s451 + $0x10] sm:$0xff] %v462
        %467 = vst [vmem:[%s451 + $0x18] sm:$0xff] %v463
        %s468 = scalar_lea.vmem %s236, 96 [#allocation7]
        %v469 = vld [vmem:[%s468] sm:$0xff]
        %v470 = vld [vmem:[%s468 + $0x8] sm:$0xff]
        %v471 = vld [vmem:[%s468 + $0x10] sm:$0xff]
        %v472 = vld [vmem:[%s468 + $0x18] sm:$0xff]
        %v473 = vadd.f32 %v410, %v411
        %v474 = vadd.f32 %v412, %v413
        %v475 = vadd.f32 %v414, %v415
        %v476 = vadd.f32 %v416, %v417
        %v477 = vadd.f32 %v469, %v473
        %v478 = vadd.f32 %v470, %v474
        %v479 = vadd.f32 %v471, %v475
        %v480 = vadd.f32 %v472, %v476
        %481 = vst [vmem:[%s468] sm:$0xff] %v477
        %482 = vst [vmem:[%s468 + $0x8] sm:$0xff] %v478
        %483 = vst [vmem:[%s468 + $0x10] sm:$0xff] %v479
        %484 = vst [vmem:[%s468 + $0x18] sm:$0xff] %v480
        %s485 = sand.u32 %s111, 1
        %s486 = scalar_lea.sflag [#allocation4], %s485
        %s487 = sand.u32 %s111, 1
        %s488 = smul.addr %s487, 128
        %s489 = scalar_lea.vmem [#allocation7], %s488
        // Predicated region
        $region41: #{tpu_custom_call.1} parent=27 // pred_check
          %p490 = pneg %p121
        $region42: #{tpu_custom_call.1} parent=27 // pred_check_branch
          %492 = sbr.rel (%p490) target = $region44
        $region43: #{tpu_custom_call.1} parent=27 // pred_region
          %s493 = sadd.s32 %s27, %s28
          %s495 = ssub.s32 2048, 2048
          %496 = vsyncadd %s486, %s495
          %s497 = smul.addr %s493, 16
          %s498 = smul.addr %s497, 128
          %s499 = scalar_lea.hbm %s2, %s498
          %s500 = sshll.u32 %s489, 4
          %s501 = int_to_ptr.vmem [resolvable:$true] %s500
          %506 = dma.vmem_to_hbm [thread:$0]  %s501, 2048, %s499, %s486, 128, 128, 8
        $region44: #{tpu_custom_call.1} parent=27 // pred_fallthru
          _
      $region28: #{tpu_custom_call.1} parent=5 // pred_fallthru
        _
      %p507 = scmp.le.s32.totalorder 2, %s17
      // Predicated region
      $region45: #{tpu_custom_call.1} parent=5 // pred_check
        %p508 = pneg %p507
      $region46: #{tpu_custom_call.1} parent=5 // pred_check_branch
        %510 = sbr.rel (%p508) target = $region48
      $region47: #{tpu_custom_call.1} parent=5 // pred_region
        %s511 = ssub.s32 %s17, 2
        // Predicated region
        $region49: #{tpu_custom_call.1} parent=47 // pred_check
          %p512 = pneg %p127
        $region50: #{tpu_custom_call.1} parent=47 // pred_check_branch
          %514 = sbr.rel (%p512) target = $region52
        $region51: #{tpu_custom_call.1} parent=47 // pred_region
          %s515 = sand.u32 %s112, 1
          %s516 = scalar_lea.sflag [#allocation4], %s515
          %s517 = sand.u32 %s112, 1
          %s518 = smul.addr %s517, 128
          %s519 = scalar_lea.vmem [#allocation7], %s518
          %520 = dma.done %s516, 2048
        $region52: #{tpu_custom_call.1} parent=47 // pred_fallthru
          _
      $region48: #{tpu_custom_call.1} parent=5 // pred_fallthru
        _
    $region6: #{tpu_custom_call.1} parent=1 // loop_footer
      %s21 = sadd.s32 1, %s17
    $region7: #{tpu_custom_call.1} parent=1 // loop_footer_branch
      %16 = sbr.rel target = $region3
    $region8: #{tpu_custom_call.1} parent=1 // loop_exit
      _
    %521 = vsyncpa [#allocation3], 1
    %s522 = scalar_lea.sflag [#allocation3], 1
    %523 = vsyncpa %s522, 1
    %524 = vsyncpa [#allocation6], 1
    %s525 = scalar_lea.sflag [#allocation6], 1
    %526 = vsyncpa %s525, 1
    %527 = vsyncpa [#allocation4], 1
    %s528 = scalar_lea.sflag [#allocation4], 1
    %529 = vsyncpa %s528, 1

</llo_original>
